<compile_context>
chip_gen: v7x
topology: tpu7x:2x2x1
jax: 0.10.0
libtpu: 0.0.40
codegen_flags: <defaults>
</compile_context>

<pallas_src>
import jax
import jax.numpy as jnp
from jax.experimental import pallas as pl
from jax.experimental.pallas import tpu as pltpu

# ----- true (PyTorch) dims -----
IN_DIM = 7
H1_DIM = 512
H2_DIM = 100
OUT_DIM = 2

# ----- lane-padded dims used only inside the kernel's matmuls -----
H2_PAD = 128
OUT_PAD = 128

# Per-step batch tile cap. 1024 rows: MXU-filling, amortizes the ~0.35us/step
# grid overhead, and guarantees >=2 grid steps (megacore-shardable on v7x)
# whenever B > 1024. VMEM per step at 1024 rows is ~5 MiB — fits every
# generation's scoped default with headroom.
MAX_BATCH_TILE = 1024


def _round_up(x, m):
    return ((x + m - 1) // m) * m


def _cdiv(a, b):
    return -(-a // b)


def _mlp_kernel(x_ref, w1_ref, b1_ref, w2_ref, b2_ref, w3_ref, b3_ref, o_ref):
    # Input cast happens here (VPU, co-issues under the MXU) instead of as a
    # separate XLA pass over HBM in the wrapper.
    x = x_ref[...].astype(w1_ref.dtype)
    h1 = jnp.dot(x, w1_ref[...], preferred_element_type=jnp.float32) + b1_ref[...]
    h1 = jnp.maximum(h1, 0.0)
    h2 = (
        jnp.dot(h1.astype(w2_ref.dtype), w2_ref[...],
                preferred_element_type=jnp.float32)
        + b2_ref[...]
    )
    h2 = jnp.maximum(h2, 0.0)
    h3 = (
        jnp.dot(h2.astype(w3_ref.dtype), w3_ref[...],
                preferred_element_type=jnp.float32)
        + b3_ref[...]
    )
    # Store only the 2 real logit lanes (lane-masked store; output stream is
    # (tile, 2) f32 instead of a 64x-overpadded (tile, 128) slab).
    o_ref[...] = h3[:, :OUT_DIM]


def prepare_params(params, compute_dtype=jnp.bfloat16):
    """Pad/cast parameters ONCE (hoisted out of the per-call hot path).

    Weights -> compute_dtype (bf16 default: full-rate MXU on v5e/v6e/v7x),
    biases -> f32 (bias add + ReLU stay on the f32 VPU path). Only lane dims
    that need it (100->128, 2->128) are zero-padded; K=7 stays unpadded.
    """
    w1, b1, w2, b2, w3, b3 = params
    w1p = jnp.asarray(w1, compute_dtype)                                   # (7, 512)
    b1p = jnp.asarray(b1, jnp.float32).reshape(1, H1_DIM)                  # (1, 512)
    w2p = (
        jnp.zeros((H1_DIM, H2_PAD), compute_dtype)
        .at[:, :H2_DIM].set(jnp.asarray(w2, compute_dtype))
    )                                                                      # (512, 128)
    b2p = jnp.zeros((1, H2_PAD), jnp.float32).at[0, :H2_DIM].set(b2)       # (1, 128)
    w3p = (
        jnp.zeros((H2_PAD, OUT_PAD), compute_dtype)
        .at[:H2_DIM, :OUT_DIM].set(jnp.asarray(w3, compute_dtype))
    )                                                                      # (128, 128)
    b3p = jnp.zeros((1, OUT_PAD), jnp.float32).at[0, :OUT_DIM].set(b3)     # (1, 128)
    return (w1p, b1p, w2p, b2p, w3p, b3p)


@jax.jit
def policy_network_forward(state, padded_params):
    """state: (B, 7) float32 -> logits (B, 2) float32.

    padded_params: output of prepare_params() (pre-padded, pre-cast).
    """
    w1p, b1p, w2p, b2p, w3p, b3p = padded_params
    B = state.shape[0]

    # Tile selection: bound padding waste to <8 rows/tile and keep tiles <=
    # MAX_BATCH_TILE. For B > MAX_BATCH_TILE this automatically yields >=2
    # grid steps (parallel axis -> both v7x TensorCores get work).
    b8 = _round_up(max(B, 1), 8)
    num_tiles = _cdiv(b8, MAX_BATCH_TILE)
    batch_tile = _round_up(_cdiv(b8, num_tiles), 8)
    Bp = batch_tile * num_tiles

    # Only pad the batch axis, only when needed; no wrapper-side dtype cast.
    x_in = state if Bp == B else jnp.pad(state, ((0, Bp - B), (0, 0)))

    def full(shape):
        return pl.BlockSpec(shape, lambda i: (0, 0))

    w_bytes = (
        w1p.size * w1p.dtype.itemsize
        + w2p.size * w2p.dtype.itemsize
        + w3p.size * w3p.dtype.itemsize
    )
    b_bytes = (b1p.size + b2p.size + b3p.size) * 4
    cost = pl.CostEstimate(
        flops=2 * Bp * (IN_DIM * H1_DIM + H1_DIM * H2_PAD + H2_PAD * OUT_PAD),
        transcendentals=0,
        bytes_accessed=(
            Bp * IN_DIM * state.dtype.itemsize   # f32 input actually streamed
            + w_bytes + b_bytes                  # grid-resident params
            + Bp * OUT_DIM * 4                   # narrow f32 output
        ),
    )

    out = pl.pallas_call(
        _mlp_kernel,
        out_shape=jax.ShapeDtypeStruct((Bp, OUT_DIM), jnp.float32),
        grid_spec=pltpu.PrefetchScalarGridSpec(
            num_scalar_prefetch=0,
            grid=(num_tiles,),
            in_specs=[
                pl.BlockSpec((batch_tile, IN_DIM), lambda i: (i, 0)),  # x (f32)
                full((IN_DIM, H1_DIM)),   # w1 (grid-invariant)
                full((1, H1_DIM)),        # b1
                full((H1_DIM, H2_PAD)),   # w2
                full((1, H2_PAD)),        # b2
                full((H2_PAD, OUT_PAD)),  # w3
                full((1, OUT_PAD)),       # b3
            ],
            out_specs=pl.BlockSpec((batch_tile, OUT_DIM), lambda i: (i, 0)),
        ),
        compiler_params=pltpu.CompilerParams(
            dimension_semantics=("parallel",),
            # Explicit limit so >=1024-row tiles also fit v5e's 16 MiB scoped
            # default; still well inside v7x's 64 MiB physical VMEM.
            vmem_limit_bytes=32 * 1024 * 1024,
        ),
        cost_estimate=cost,
    )(x_in, w1p, b1p, w2p, b2p, w3p, b3p)

    return out if Bp == B else out[:B]


def init_params(key):
    """Deterministic init mimicking PyTorch nn.Linear default U(-1/sqrt(fan_in), +)."""
    ks = jax.random.split(key, 6)

    def lin(kw, kb, fan_in, fan_out):
        bound = 1.0 / jnp.sqrt(jnp.float32(fan_in))
        w = jax.random.uniform(kw, (fan_in, fan_out), jnp.float32, -bound, bound)
        b = jax.random.uniform(kb, (fan_out,), jnp.float32, -bound, bound)
        return w, b

    w1, b1 = lin(ks[0], ks[1], IN_DIM, H1_DIM)
    w2, b2 = lin(ks[2], ks[3], H1_DIM, H2_DIM)
    w3, b3 = lin(ks[4], ks[5], H2_DIM, OUT_DIM)
    return (w1, b1, w2, b2, w3, b3)


def _reference_f32(state, params):
    w1, b1, w2, b2, w3, b3 = params
    h1 = jnp.maximum(state @ w1 + b1, 0.0)
    h2 = jnp.maximum(h1 @ w2 + b2, 0.0)
    return h2 @ w3 + b3


def _reference_mixed(state, params, compute_dtype):
    """Same cast pattern as the kernel (bf16 operands, f32 accumulation/bias)."""
    w1, b1, w2, b2, w3, b3 = params
    cd = compute_dtype
    h1 = jnp.maximum(
        jnp.dot(state.astype(cd), w1.astype(cd),
                preferred_element_type=jnp.float32) + b1, 0.0)
    h2 = jnp.maximum(
        jnp.dot(h1.astype(cd), w2.astype(cd),
                preferred_element_type=jnp.float32) + b2, 0.0)
    return jnp.dot(h2.astype(cd), w3.astype(cd),
                   preferred_element_type=jnp.float32) + b3


if __name__ == "__main__":
    key = jax.random.PRNGKey(0)
    k_param, k_x = jax.random.split(key)

    params = init_params(k_param)
    state = jax.random.normal(k_x, (2, IN_DIM), jnp.float32)  # batch=2, features=7

    # --- exact path (f32 operands): bit-level semantics of the nn.Module ---
    pp_f32 = prepare_params(params, compute_dtype=jnp.float32)
    logits_f32 = policy_network_forward(state, pp_f32)
    jax.block_until_ready(logits_f32)
    ref_f32 = _reference_f32(state, params)
    assert logits_f32.shape == (2, OUT_DIM)
    assert jnp.allclose(logits_f32, ref_f32, atol=1e-4, rtol=1e-4)

    # --- perf path (bf16 operands incl. input cast, f32 accumulation) ---
    pp_bf16 = prepare_params(params, compute_dtype=jnp.bfloat16)
    logits_bf16 = policy_network_forward(state, pp_bf16)
    jax.block_until_ready(logits_bf16)
    ref_bf16 = _reference_mixed(state, params, jnp.bfloat16)
    assert logits_bf16.shape == (2, OUT_DIM)
    assert jnp.allclose(logits_bf16, ref_bf16, atol=2e-3, rtol=2e-3)
    assert jnp.allclose(logits_bf16, ref_f32, atol=5e-2, rtol=5e-2)

    # Larger, non-multiple batch to exercise multi-tile grid + ragged padding.
    state_big = jax.random.normal(k_x, (1030, IN_DIM), jnp.float32)
    logits_big = policy_network_forward(state_big, pp_bf16)
    jax.block_until_ready(logits_big)
    ref_big = _reference_mixed(state_big, params, jnp.bfloat16)
    assert logits_big.shape == (1030, OUT_DIM)
    assert jnp.allclose(logits_big, ref_big, atol=2e-3, rtol=2e-3)

    # TODO(synk): sample_action's Categorical sampling / numpy round-trip is
    # host-side control logic, not a kernel op; left to the caller.
    print("KERNEL_OK")
</pallas_src>

<mosaic_0001>
module attributes {stable_mosaic.version = 11 : i64} {
  func.func @_mlp_kernel(%arg0: i32, %arg1: memref<8x7xf32, #tpu.memory_space<vmem>>, %arg2: memref<7x512xf32, #tpu.memory_space<vmem>>, %arg3: memref<1x512xf32, #tpu.memory_space<vmem>>, %arg4: memref<512x128xf32, #tpu.memory_space<vmem>>, %arg5: memref<1x128xf32, #tpu.memory_space<vmem>>, %arg6: memref<128x128xf32, #tpu.memory_space<vmem>>, %arg7: memref<1x128xf32, #tpu.memory_space<vmem>>, %arg8: memref<8x2xf32, #tpu.memory_space<vmem>>) attributes {dimension_semantics = [#tpu.dimension_semantics<parallel>], iteration_bounds = array<i64: 1>, scalar_prefetch = 0 : i64, scratch_operands = 0 : i64, tpu.core_type = #tpu.core_type<tc>, window_params = [{transform_indices = @transform_0, window_bounds = array<i64: 8, 7>}, {pipeline_mode = #tpu.pipeline_mode<synchronous>, transform_indices = @transform_1, window_bounds = array<i64: 7, 512>}, {pipeline_mode = #tpu.pipeline_mode<synchronous>, transform_indices = @transform_2, window_bounds = array<i64: 1, 512>}, {pipeline_mode = #tpu.pipeline_mode<synchronous>, transform_indices = @transform_3, window_bounds = array<i64: 512, 128>}, {pipeline_mode = #tpu.pipeline_mode<synchronous>, transform_indices = @transform_4, window_bounds = array<i64: 1, 128>}, {pipeline_mode = #tpu.pipeline_mode<synchronous>, transform_indices = @transform_5, window_bounds = array<i64: 128, 128>}, {pipeline_mode = #tpu.pipeline_mode<synchronous>, transform_indices = @transform_6, window_bounds = array<i64: 1, 128>}, {transform_indices = @transform_7, window_bounds = array<i64: 8, 2>}]} {
    %c0 = arith.constant 0 : index
    %c0_0 = arith.constant 0 : index
    %0 = vector.load %arg1[%c0, %c0_0] : memref<8x7xf32, #tpu.memory_space<vmem>>, vector<8x7xf32>
    %c0_1 = arith.constant 0 : index
    %c0_2 = arith.constant 0 : index
    %1 = vector.load %arg2[%c0_1, %c0_2] : memref<7x512xf32, #tpu.memory_space<vmem>>, vector<7x512xf32>
    %cst = arith.constant dense<0.000000e+00> : vector<8x512xf32>
    %2 = tpu.matmul %0, %1, %cst {dimension_numbers = #tpu.dot_dimension_numbers<[1], [0], [0], [1], [0, 0, 1, 1], [], []>} : vector<8x7xf32>, vector<7x512xf32>, vector<8x512xf32> -> vector<8x512xf32>
    %c0_3 = arith.constant 0 : index
    %c0_4 = arith.constant 0 : index
    %3 = vector.load %arg3[%c0_3, %c0_4] : memref<1x512xf32, #tpu.memory_space<vmem>>, vector<1x512xf32>
    %4 = vector.broadcast %3 : vector<1x512xf32> to vector<8x512xf32>
    %5 = arith.addf %2, %4 : vector<8x512xf32>
    %cst_5 = arith.constant 0.000000e+00 : f32
    %6 = vector.broadcast %cst_5 : f32 to vector<8x512xf32>
    %7 = arith.maximumf %5, %6 : vector<8x512xf32>
    %c0_6 = arith.constant 0 : index
    %c0_7 = arith.constant 0 : index
    %8 = vector.load %arg4[%c0_6, %c0_7] : memref<512x128xf32, #tpu.memory_space<vmem>>, vector<512x128xf32>
    %cst_8 = arith.constant dense<0.000000e+00> : vector<8x128xf32>
    %9 = tpu.matmul %7, %8, %cst_8 {dimension_numbers = #tpu.dot_dimension_numbers<[1], [0], [0], [1], [0, 0, 1, 1], [], []>} : vector<8x512xf32>, vector<512x128xf32>, vector<8x128xf32> -> vector<8x128xf32>
    %c0_9 = arith.constant 0 : index
    %c0_10 = arith.constant 0 : index
    %10 = vector.load %arg5[%c0_9, %c0_10] : memref<1x128xf32, #tpu.memory_space<vmem>>, vector<1x128xf32>
    %11 = vector.broadcast %10 : vector<1x128xf32> to vector<8x128xf32>
    %12 = arith.addf %9, %11 : vector<8x128xf32>
    %cst_11 = arith.constant 0.000000e+00 : f32
    %13 = vector.broadcast %cst_11 : f32 to vector<8x128xf32>
    %14 = arith.maximumf %12, %13 : vector<8x128xf32>
    %c0_12 = arith.constant 0 : index
    %c0_13 = arith.constant 0 : index
    %15 = vector.load %arg6[%c0_12, %c0_13] : memref<128x128xf32, #tpu.memory_space<vmem>>, vector<128x128xf32>
    %cst_14 = arith.constant dense<0.000000e+00> : vector<8x128xf32>
    %16 = tpu.matmul %14, %15, %cst_14 {dimension_numbers = #tpu.dot_dimension_numbers<[1], [0], [0], [1], [0, 0, 1, 1], [], []>} : vector<8x128xf32>, vector<128x128xf32>, vector<8x128xf32> -> vector<8x128xf32>
    %c0_15 = arith.constant 0 : index
    %c0_16 = arith.constant 0 : index
    %17 = vector.load %arg7[%c0_15, %c0_16] : memref<1x128xf32, #tpu.memory_space<vmem>>, vector<1x128xf32>
    %18 = vector.broadcast %17 : vector<1x128xf32> to vector<8x128xf32>
    %19 = arith.addf %16, %18 : vector<8x128xf32>
    %20 = vector.extract_strided_slice %19 {offsets = [0, 0], sizes = [8, 2], strides = [1, 1]} : vector<8x128xf32> to vector<8x2xf32>
    %c0_17 = arith.constant 0 : index
    %c0_18 = arith.constant 0 : index
    %21 = vector.load %arg8[%c0_17, %c0_18] : memref<8x2xf32, #tpu.memory_space<vmem>>, vector<8x2xf32>
    tpu.vector_store %arg8[%c0_17, %c0_18], %20 {strides = array<i32>} : memref<8x2xf32, #tpu.memory_space<vmem>>, vector<8x2xf32>,
    return
  }
  func.func @transform_0(%arg0: i32) -> (i32, i32) {
    %c0_i32 = arith.constant 0 : i32
    %c0_i32_0 = arith.constant 0 : i32
    return %arg0, %c0_i32 : i32, i32
  }
  func.func @transform_1(%arg0: i32) -> (i32, i32) {
    %c0_i32 = arith.constant 0 : i32
    %c0_i32_0 = arith.constant 0 : i32
    %c0_i32_1 = arith.constant 0 : i32
    return %c0_i32, %c0_i32_0 : i32, i32
  }
  func.func @transform_2(%arg0: i32) -> (i32, i32) {
    %c0_i32 = arith.constant 0 : i32
    %c0_i32_0 = arith.constant 0 : i32
    %c0_i32_1 = arith.constant 0 : i32
    return %c0_i32, %c0_i32_0 : i32, i32
  }
  func.func @transform_3(%arg0: i32) -> (i32, i32) {
    %c0_i32 = arith.constant 0 : i32
    %c0_i32_0 = arith.constant 0 : i32
    %c0_i32_1 = arith.constant 0 : i32
    return %c0_i32, %c0_i32_0 : i32, i32
  }
  func.func @transform_4(%arg0: i32) -> (i32, i32) {
    %c0_i32 = arith.constant 0 : i32
    %c0_i32_0 = arith.constant 0 : i32
    %c0_i32_1 = arith.constant 0 : i32
    return %c0_i32, %c0_i32_0 : i32, i32
  }
  func.func @transform_5(%arg0: i32) -> (i32, i32) {
    %c0_i32 = arith.constant 0 : i32
    %c0_i32_0 = arith.constant 0 : i32
    %c0_i32_1 = arith.constant 0 : i32
    return %c0_i32, %c0_i32_0 : i32, i32
  }
  func.func @transform_6(%arg0: i32) -> (i32, i32) {
    %c0_i32 = arith.constant 0 : i32
    %c0_i32_0 = arith.constant 0 : i32
    %c0_i32_1 = arith.constant 0 : i32
    return %c0_i32, %c0_i32_0 : i32, i32
  }
  func.func @transform_7(%arg0: i32) -> (i32, i32) {
    %c0_i32 = arith.constant 0 : i32
    %c0_i32_0 = arith.constant 0 : i32
    return %arg0, %c0_i32 : i32, i32
  }
}

</mosaic_0001>

<llo_original>
// kernel: policy_network_forward.1
$region0: #{policy_network_forward.1}
  #allocation0 [shape = 'u32[]', space=smem, size = 0x4, offset = 0x4, fixed_abs, tag = 'smem constant byte address 0x4 - core index']
  #allocation1 [shape = 'u32[144,128]{1,0:T(1,128)}', space=vmem, size = 0x12000, scoped, tag = 'internal scratch']
  %s0 = inlined_call_operand.vmem [shape: f32[8,7], index: 0, kind: input, shape index: {}]
  %s1 = inlined_call_operand.hbm [shape: f32[7,512], index: 1, kind: input, shape index: {}]
  %s2 = inlined_call_operand.vmem [shape: f32[1,512], index: 2, kind: input, shape index: {}]
  %s3 = inlined_call_operand.hbm [shape: f32[512,128], index: 3, kind: input, shape index: {}]
  %s4 = inlined_call_operand.vmem [shape: f32[1,128], index: 4, kind: input, shape index: {}]
  %s5 = inlined_call_operand.hbm [shape: f32[128,128], index: 5, kind: input, shape index: {}]
  %s6 = inlined_call_operand.vmem [shape: f32[1,128], index: 6, kind: input, shape index: {}]
  %s7 = inlined_call_operand.vmem [shape: f32[8,2], index: 7, kind: output, shape index: {}]
  %s8 = sld [smem:[#allocation0]]
  $region50: #{policy_network_forward.1} parent=0
    _
  %s10 = ssub.s32 1, %s8
  %s11 = scalar_select 0, %s10, %s8
  $region1: #{policy_network_forward.1} parent=0
    #allocation2 [shape = 'u8[16384]{0}', space=vmem, size = 0x4000, scoped, tag = 'input window, operand 1, single buffered']
    #allocation3 [shape = 's32[1]{0}', space=sflag, size = 0x4, scoped, tag = 'scoped memory for policy_network_forward.1']
    #allocation4 [shape = 'u8[262144]{0}', space=vmem, size = 0x40000, scoped, tag = 'input window, operand 3, single buffered']
    #allocation5 [shape = 's32[1]{0}', space=sflag, size = 0x4, scoped, tag = 'scoped memory for policy_network_forward.1']
    #allocation6 [shape = 'u8[65536]{0}', space=vmem, size = 0x10000, scoped, tag = 'input window, operand 5, single buffered']
    %12 = vsyncpa [#allocation3], 0
    %13 = vsyncpa [#allocation5], 0
    // Predicated region
    $region2: #{policy_network_forward.1} parent=1 // pred_check
      _
    $region3: #{policy_network_forward.1} parent=1 // pred_check_branch
      %15 = sbr.rel (0) target = $region5
    $region4: #{policy_network_forward.1} parent=1 // pred_region
      _
    $region5: #{policy_network_forward.1} parent=1 // pred_fallthru
      _
    // Predicated region
    $region6: #{policy_network_forward.1} parent=1 // pred_check
      _
    $region7: #{policy_network_forward.1} parent=1 // pred_check_branch
      %17 = sbr.rel (0) target = $region9
    $region8: #{policy_network_forward.1} parent=1 // pred_region
      %s19 = ssub.s32 512, 512
      %20 = vsyncadd [#allocation3], %s19
      %s22 = sshll.u32 [#allocation2], 4
      %s23 = int_to_ptr.vmem [resolvable:$true] %s22
      %25 = dma.hbm_to_vmem [thread:$0]  %s1, 512, %s23, [#allocation3]
    $region9: #{policy_network_forward.1} parent=1 // pred_fallthru
      _
    // Predicated region
    $region10: #{policy_network_forward.1} parent=1 // pred_check
      _
    $region11: #{policy_network_forward.1} parent=1 // pred_check_branch
      %27 = sbr.rel (0) target = $region13
    $region12: #{policy_network_forward.1} parent=1 // pred_region
      _
    $region13: #{policy_network_forward.1} parent=1 // pred_fallthru
      _
    // Predicated region
    $region14: #{policy_network_forward.1} parent=1 // pred_check
      _
    $region15: #{policy_network_forward.1} parent=1 // pred_check_branch
      %29 = sbr.rel (0) target = $region17
    $region16: #{policy_network_forward.1} parent=1 // pred_region
      %s31 = ssub.s32 8192, 8192
      %32 = vsyncadd [#allocation5], %s31
      %s33 = sshll.u32 [#allocation4], 4
      %s34 = int_to_ptr.vmem [resolvable:$true] %s33
      %39 = dma.hbm_to_vmem [thread:$0]  %s3, 8192, %s34, [#allocation5], 128, 128, 8
    $region17: #{policy_network_forward.1} parent=1 // pred_fallthru
      _
    // Predicated region
    $region18: #{policy_network_forward.1} parent=1 // pred_check
      _
    $region19: #{policy_network_forward.1} parent=1 // pred_check_branch
      %41 = sbr.rel (0) target = $region21
    $region20: #{policy_network_forward.1} parent=1 // pred_region
      _
    $region21: #{policy_network_forward.1} parent=1 // pred_fallthru
      _
    // Predicated region
    $region22: #{policy_network_forward.1} parent=1 // pred_check
      _
    $region23: #{policy_network_forward.1} parent=1 // pred_check_branch
      %43 = sbr.rel (0) target = $region25
    $region24: #{policy_network_forward.1} parent=1 // pred_region
      %s45 = ssub.s32 2048, 2048
      %46 = vsyncadd [#allocation5], %s45
      %s47 = sshll.u32 [#allocation6], 4
      %s48 = int_to_ptr.vmem [resolvable:$true] %s47
      %53 = dma.hbm_to_vmem [thread:$0]  %s5, 2048, %s48, [#allocation5], 128, 128, 8
    $region25: #{policy_network_forward.1} parent=1 // pred_fallthru
      _
    // Predicated region
    $region26: #{policy_network_forward.1} parent=1 // pred_check
      _
    $region27: #{policy_network_forward.1} parent=1 // pred_check_branch
      %55 = sbr.rel (0) target = $region29
    $region28: #{policy_network_forward.1} parent=1 // pred_region
      _
    $region29: #{policy_network_forward.1} parent=1 // pred_fallthru
      _
    // Predicated region
    $region30: #{policy_network_forward.1} parent=1 // pred_check
      _
    $region31: #{policy_network_forward.1} parent=1 // pred_check_branch
      %57 = sbr.rel (0) target = $region33
    $region32: #{policy_network_forward.1} parent=1 // pred_region
      %58 = dma.done [#allocation3], 512
    $region33: #{policy_network_forward.1} parent=1 // pred_fallthru
      _
    // Predicated region
    $region34: #{policy_network_forward.1} parent=1 // pred_check
      _
    $region35: #{policy_network_forward.1} parent=1 // pred_check_branch
      %60 = sbr.rel (0) target = $region37
    $region36: #{policy_network_forward.1} parent=1 // pred_region
      %61 = dma.done [#allocation5], 8192
    $region37: #{policy_network_forward.1} parent=1 // pred_fallthru
      _
    // Predicated region
    $region38: #{policy_network_forward.1} parent=1 // pred_check
      _
    $region39: #{policy_network_forward.1} parent=1 // pred_check_branch
      %63 = sbr.rel (0) target = $region41
    $region40: #{policy_network_forward.1} parent=1 // pred_region
      %64 = dma.done [#allocation5], 2048
    $region41: #{policy_network_forward.1} parent=1 // pred_fallthru
      _
    %v65 = vld [vmem:[%s0] sm:$0xff]
    %v66 = vld [vmem:[#allocation2] sm:$0x7f]
    %v67 = vld [vmem:[#allocation2 + $0x8] sm:$0x7f]
    %v68 = vld [vmem:[#allocation2 + $0x10] sm:$0x7f]
    %v69 = vld [vmem:[#allocation2 + $0x18] sm:$0x7f]
    %v70 = vld [vmem:[%s2] sm:$0xf]
    %v72 = vlaneseq
    %v73 = vshrl.u32 %v72, 7
    %v74 = vsub.s32 0, %v73
    %v75 = vrot.slane %v70, %v74
    %v76 = vlaneseq
    %v77 = vshrl.u32 %v76, 7
    %v78 = vsub.s32 1, %v77
    %v79 = vrot.slane %v70, %v78
    %v80 = vlaneseq
    %v81 = vshrl.u32 %v80, 7
    %v82 = vsub.s32 2, %v81
    %v83 = vrot.slane %v70, %v82
    %v84 = vlaneseq
    %v85 = vshrl.u32 %v84, 7
    %v86 = vsub.s32 3, %v85
    %v87 = vrot.slane %v70, %v86
    %vm92 = vcmask 56320
    %v94 = vsel %vm92, %v65, 0
    %vm96 = vcmask 1046528
    %v98 = vsel %vm96, %v66, 0
    %v101 = vsel %vm96, %v67, 0
    %v104 = vsel %vm96, %v68, 0
    %v107 = vsel %vm96, %v69, 0
    %109 = vmatprep.subr.mxu0 %v101
    %110 = vmatpush1.msra.mxu0 %v98
    %111 = vmatprep.subr.mxu0 0.0
    %112 = vmatpush1.msra.mxu0 0.0
    %113 = vmatprep.subr.mxu0 0.0
    %114 = vmatpush1.msra.mxu0 0.0
    %115 = vmatprep.subr.mxu0 0.0
    %116 = vmatpush1.msra.mxu0 0.0
    %117 = vmatprep.subr.mxu0 0.0
    %118 = vmatpush1.msra.mxu0 0.0
    %119 = vmatprep.subr.mxu0 0.0
    %120 = vmatpush1.msra.mxu0 0.0
    %121 = vmatprep.subr.mxu0 0.0
    %122 = vmatpush1.msra.mxu0 0.0
    %123 = vmatprep.subr.mxu0 0.0
    %124 = vmatpush1.msra.mxu0 0.0
    %125 = vmatprep.subr.mxu0 0.0
    %126 = vmatpush1.msra.mxu0 0.0
    %127 = vmatprep.subr.mxu0 0.0
    %128 = vmatpush1.msra.mxu0 0.0
    %129 = vmatprep.subr.mxu0 0.0
    %130 = vmatpush1.msra.mxu0 0.0
    %131 = vmatprep.subr.mxu0 0.0
    %132 = vmatpush1.msra.mxu0 0.0
    %133 = vmatprep.subr.mxu0 0.0
    %134 = vmatpush1.msra.mxu0 0.0
    %135 = vmatprep.subr.mxu0 0.0
    %136 = vmatpush1.msra.mxu0 0.0
    %137 = vmatprep.subr.mxu0 0.0
    %138 = vmatpush1.msra.mxu0 0.0
    %139 = vmatprep.subr.mxu0 0.0
    %140 = vmatpush1.msra.mxu0 0.0
    %141 = vmatprep.subr.mxu0 0.0
    %142 = vmatpush1.msra.mxu0 0.0
    %143 = vmatprep.subr.mxu0 0.0
    %144 = vmatpush1.msra.mxu0 0.0
    %145 = vmatprep.subr.mxu0 0.0
    %146 = vmatpush1.msra.mxu0 0.0
    %147 = vmatprep.subr.mxu0 0.0
    %148 = vmatpush1.msra.mxu0 0.0
    %149 = vmatprep.subr.mxu0 0.0
    %150 = vmatpush1.msra.mxu0 0.0
    %151 = vmatprep.subr.mxu0 0.0
    %152 = vmatpush1.msra.mxu0 0.0
    %153 = vmatprep.subr.mxu0 0.0
    %154 = vmatpush1.msra.mxu0 0.0
    %155 = vmatprep.subr.mxu0 0.0
    %156 = vmatpush1.msra.mxu0 0.0
    %157 = vmatprep.subr.mxu0 0.0
    %158 = vmatpush1.msra.mxu0 0.0
    %159 = vmatprep.subr.mxu0 0.0
    %160 = vmatpush1.msra.mxu0 0.0
    %161 = vmatprep.subr.mxu0 0.0
    %162 = vmatpush1.msra.mxu0 0.0
    %163 = vmatprep.subr.mxu0 0.0
    %164 = vmatpush1.msra.mxu0 0.0
    %165 = vmatprep.subr.mxu0 0.0
    %166 = vmatpush1.msra.mxu0 0.0
    %167 = vmatprep.subr.mxu0 0.0
    %168 = vmatpush1.msra.mxu0 0.0
    %169 = vmatprep.subr.mxu0 0.0
    %170 = vmatpush1.msra.mxu0 0.0
    %171 = vmatprep.subr.mxu0 0.0
    %172 = vmatpush1.msra.mxu0 0.0
    %173 = vmatprep.mubr.f32.mxu0 0.0
    %174 = vmatmul.mubr.f32.gmra.mrb[0].mxu0 %v94
    %v175 = vpop.f32.mrb[0].mxu0
    %v176 = vadd.f32 %v75, %v175
    %v177 = vpop.f32.mrb[0].mxu0
    %v178 = vadd.f32 %v79, %v177
    %179 = vdwg.mxu0
    %180 = vmatprep.subr.mxu0 %v107
    %181 = vmatpush1.msra.mxu0 %v104
    %182 = vmatprep.subr.mxu0 0.0
    %183 = vmatpush1.msra.mxu0 0.0
    %184 = vmatprep.subr.mxu0 0.0
    %185 = vmatpush1.msra.mxu0 0.0
    %186 = vmatprep.subr.mxu0 0.0
    %187 = vmatpush1.msra.mxu0 0.0
    %188 = vmatprep.subr.mxu0 0.0
    %189 = vmatpush1.msra.mxu0 0.0
    %190 = vmatprep.subr.mxu0 0.0
    %191 = vmatpush1.msra.mxu0 0.0
    %192 = vmatprep.subr.mxu0 0.0
    %193 = vmatpush1.msra.mxu0 0.0
    %194 = vmatprep.subr.mxu0 0.0
    %195 = vmatpush1.msra.mxu0 0.0
    %196 = vmatprep.subr.mxu0 0.0
    %197 = vmatpush1.msra.mxu0 0.0
    %198 = vmatprep.subr.mxu0 0.0
    %199 = vmatpush1.msra.mxu0 0.0
    %200 = vmatprep.subr.mxu0 0.0
    %201 = vmatpush1.msra.mxu0 0.0
    %202 = vmatprep.subr.mxu0 0.0
    %203 = vmatpush1.msra.mxu0 0.0
    %204 = vmatprep.subr.mxu0 0.0
    %205 = vmatpush1.msra.mxu0 0.0
    %206 = vmatprep.subr.mxu0 0.0
    %207 = vmatpush1.msra.mxu0 0.0
    %208 = vmatprep.subr.mxu0 0.0
    %209 = vmatpush1.msra.mxu0 0.0
    %210 = vmatprep.subr.mxu0 0.0
    %211 = vmatpush1.msra.mxu0 0.0
    %212 = vmatprep.subr.mxu0 0.0
    %213 = vmatpush1.msra.mxu0 0.0
    %214 = vmatprep.subr.mxu0 0.0
    %215 = vmatpush1.msra.mxu0 0.0
    %216 = vmatprep.subr.mxu0 0.0
    %217 = vmatpush1.msra.mxu0 0.0
    %218 = vmatprep.subr.mxu0 0.0
    %219 = vmatpush1.msra.mxu0 0.0
    %220 = vmatprep.subr.mxu0 0.0
    %221 = vmatpush1.msra.mxu0 0.0
    %222 = vmatprep.subr.mxu0 0.0
    %223 = vmatpush1.msra.mxu0 0.0
    %224 = vmatprep.subr.mxu0 0.0
    %225 = vmatpush1.msra.mxu0 0.0
    %226 = vmatprep.subr.mxu0 0.0
    %227 = vmatpush1.msra.mxu0 0.0
    %228 = vmatprep.subr.mxu0 0.0
    %229 = vmatpush1.msra.mxu0 0.0
    %230 = vmatprep.subr.mxu0 0.0
    %231 = vmatpush1.msra.mxu0 0.0
    %232 = vmatprep.subr.mxu0 0.0
    %233 = vmatpush1.msra.mxu0 0.0
    %234 = vmatprep.subr.mxu0 0.0
    %235 = vmatpush1.msra.mxu0 0.0
    %236 = vmatprep.subr.mxu0 0.0
    %237 = vmatpush1.msra.mxu0 0.0
    %238 = vmatprep.subr.mxu0 0.0
    %239 = vmatpush1.msra.mxu0 0.0
    %240 = vmatprep.subr.mxu0 0.0
    %241 = vmatpush1.msra.mxu0 0.0
    %242 = vmatprep.subr.mxu0 0.0
    %243 = vmatpush1.msra.mxu0 0.0
    %244 = vmatprep.mubr.f32.mxu0 0.0
    %245 = vmatmul.mubr.f32.gmra.mrb[0].mxu0 %v94
    %v246 = vpop.f32.mrb[0].mxu0
    %v247 = vadd.f32 %v83, %v246
    %v248 = vpop.f32.mrb[0].mxu0
    %v249 = vadd.f32 %v87, %v248
    %250 = vdwg.mxu0
    %v251 = vmax.f32 %v176, 0.0
    %v252 = vmax.f32 %v178, 0.0
    %v253 = vmax.f32 %v247, 0.0
    %v254 = vmax.f32 %v249, 0.0
    %v255 = vld [vmem:[#allocation4] sm:$0xff]
    %v256 = vld [vmem:[#allocation4 + $0x8] sm:$0xff]
    %v257 = vld [vmem:[#allocation4 + $0x10] sm:$0xff]
    %v258 = vld [vmem:[#allocation4 + $0x18] sm:$0xff]
    %v259 = vld [vmem:[#allocation4 + $0x20] sm:$0xff]
    %v260 = vld [vmem:[#allocation4 + $0x28] sm:$0xff]
    %v261 = vld [vmem:[#allocation4 + $0x30] sm:$0xff]
    %v262 = vld [vmem:[#allocation4 + $0x38] sm:$0xff]
    %v263 = vld [vmem:[#allocation4 + $0x40] sm:$0xff]
    %v264 = vld [vmem:[#allocation4 + $0x48] sm:$0xff]
    %v265 = vld [vmem:[#allocation4 + $0x50] sm:$0xff]
    %v266 = vld [vmem:[#allocation4 + $0x58] sm:$0xff]
    %v267 = vld [vmem:[#allocation4 + $0x60] sm:$0xff]
    %v268 = vld [vmem:[#allocation4 + $0x68] sm:$0xff]
    %v269 = vld [vmem:[#allocation4 + $0x70] sm:$0xff]
    %v270 = vld [vmem:[#allocation4 + $0x78] sm:$0xff]
    %v271 = vld [vmem:[#allocation4 + $0x80] sm:$0xff]
    %v272 = vld [vmem:[#allocation4 + $0x88] sm:$0xff]
    %v273 = vld [vmem:[#allocation4 + $0x90] sm:$0xff]
    %v274 = vld [vmem:[#allocation4 + $0x98] sm:$0xff]
    %v275 = vld [vmem:[#allocation4 + $0xa0] sm:$0xff]
    %v276 = vld [vmem:[#allocation4 + $0xa8] sm:$0xff]
    %v277 = vld [vmem:[#allocation4 + $0xb0] sm:$0xff]
    %v278 = vld [vmem:[#allocation4 + $0xb8] sm:$0xff]
    %v279 = vld [vmem:[#allocation4 + $0xc0] sm:$0xff]
    %v280 = vld [vmem:[#allocation4 + $0xc8] sm:$0xff]
    %v281 = vld [vmem:[#allocation4 + $0xd0] sm:$0xff]
    %v282 = vld [vmem:[#allocation4 + $0xd8] sm:$0xff]
    %v283 = vld [vmem:[#allocation4 + $0xe0] sm:$0xff]
    %v284 = vld [vmem:[#allocation4 + $0xe8] sm:$0xff]
    %v285 = vld [vmem:[#allocation4 + $0xf0] sm:$0xff]
    %v286 = vld [vmem:[#allocation4 + $0xf8] sm:$0xff]
    %v287 = vld [vmem:[#allocation4 + $0x100] sm:$0xff]
    %v288 = vld [vmem:[#allocation4 + $0x108] sm:$0xff]
    %v289 = vld [vmem:[#allocation4 + $0x110] sm:$0xff]
    %v290 = vld [vmem:[#allocation4 + $0x118] sm:$0xff]
    %v291 = vld [vmem:[#allocation4 + $0x120] sm:$0xff]
    %v292 = vld [vmem:[#allocation4 + $0x128] sm:$0xff]
    %v293 = vld [vmem:[#allocation4 + $0x130] sm:$0xff]
    %v294 = vld [vmem:[#allocation4 + $0x138] sm:$0xff]
    %v295 = vld [vmem:[#allocation4 + $0x140] sm:$0xff]
    %v296 = vld [vmem:[#allocation4 + $0x148] sm:$0xff]
    %v297 = vld [vmem:[#allocation4 + $0x150] sm:$0xff]
    %v298 = vld [vmem:[#allocation4 + $0x158] sm:$0xff]
    %v299 = vld [vmem:[#allocation4 + $0x160] sm:$0xff]
    %v300 = vld [vmem:[#allocation4 + $0x168] sm:$0xff]
    %v301 = vld [vmem:[#allocation4 + $0x170] sm:$0xff]
    %v302 = vld [vmem:[#allocation4 + $0x178] sm:$0xff]
    %v303 = vld [vmem:[#allocation4 + $0x180] sm:$0xff]
    %v304 = vld [vmem:[#allocation4 + $0x188] sm:$0xff]
    %v305 = vld [vmem:[#allocation4 + $0x190] sm:$0xff]
    %v306 = vld [vmem:[#allocation4 + $0x198] sm:$0xff]
    %v307 = vld [vmem:[#allocation4 + $0x1a0] sm:$0xff]
    %v308 = vld [vmem:[#allocation4 + $0x1a8] sm:$0xff]
    %v309 = vld [vmem:[#allocation4 + $0x1b0] sm:$0xff]
    %v310 = vld [vmem:[#allocation4 + $0x1b8] sm:$0xff]
    %v311 = vld [vmem:[#allocation4 + $0x1c0] sm:$0xff]
    %v312 = vld [vmem:[#allocation4 + $0x1c8] sm:$0xff]
    %v313 = vld [vmem:[#allocation4 + $0x1d0] sm:$0xff]
    %v314 = vld [vmem:[#allocation4 + $0x1d8] sm:$0xff]
    %v315 = vld [vmem:[#allocation4 + $0x1e0] sm:$0xff]
    %v316 = vld [vmem:[#allocation4 + $0x1e8] sm:$0xff]
    %v317 = vld [vmem:[#allocation4 + $0x1f0] sm:$0xff]
    %v318 = vld [vmem:[#allocation4 + $0x1f8] sm:$0xff]
    %v319 = vld [vmem:[%s4] sm:$0x1]
    %v321 = vlaneseq
    %v322 = vshrl.u32 %v321, 7
    %v323 = vsub.s32 0, %v322
    %v324 = vrot.slane %v319, %v323
    %326 = vmatprep.subr.mxu0 0.0
    %327 = vmatpush1.msra.mxu0 %v255
    %328 = vmatprep.subr.mxu0 0.0
    %329 = vmatpush1.msra.mxu0 %v256
    %330 = vmatprep.subr.mxu0 0.0
    %331 = vmatpush1.msra.mxu0 %v257
    %332 = vmatprep.subr.mxu0 0.0
    %333 = vmatpush1.msra.mxu0 %v258
    %334 = vmatprep.subr.mxu0 0.0
    %335 = vmatpush1.msra.mxu0 %v259
    %336 = vmatprep.subr.mxu0 0.0
    %337 = vmatpush1.msra.mxu0 %v260
    %338 = vmatprep.subr.mxu0 0.0
    %339 = vmatpush1.msra.mxu0 %v261
    %340 = vmatprep.subr.mxu0 0.0
    %341 = vmatpush1.msra.mxu0 %v262
    %342 = vmatprep.subr.mxu0 0.0
    %343 = vmatpush1.msra.mxu0 %v263
    %344 = vmatprep.subr.mxu0 0.0
    %345 = vmatpush1.msra.mxu0 %v264
    %346 = vmatprep.subr.mxu0 0.0
    %347 = vmatpush1.msra.mxu0 %v265
    %348 = vmatprep.subr.mxu0 0.0
    %349 = vmatpush1.msra.mxu0 %v266
    %350 = vmatprep.subr.mxu0 0.0
    %351 = vmatpush1.msra.mxu0 %v267
    %352 = vmatprep.subr.mxu0 0.0
    %353 = vmatpush1.msra.mxu0 %v268
    %354 = vmatprep.subr.mxu0 0.0
    %355 = vmatpush1.msra.mxu0 %v269
    %356 = vmatprep.subr.mxu0 0.0
    %357 = vmatpush1.msra.mxu0 %v270
    %358 = vmatprep.subr.mxu0 0.0
    %359 = vmatpush1.msra.mxu0 %v271
    %360 = vmatprep.subr.mxu0 0.0
    %361 = vmatpush1.msra.mxu0 %v272
    %362 = vmatprep.subr.mxu0 0.0
    %363 = vmatpush1.msra.mxu0 %v273
    %364 = vmatprep.subr.mxu0 0.0
    %365 = vmatpush1.msra.mxu0 %v274
    %366 = vmatprep.subr.mxu0 0.0
    %367 = vmatpush1.msra.mxu0 %v275
    %368 = vmatprep.subr.mxu0 0.0
    %369 = vmatpush1.msra.mxu0 %v276
    %370 = vmatprep.subr.mxu0 0.0
    %371 = vmatpush1.msra.mxu0 %v277
    %372 = vmatprep.subr.mxu0 0.0
    %373 = vmatpush1.msra.mxu0 %v278
    %374 = vmatprep.subr.mxu0 0.0
    %375 = vmatpush1.msra.mxu0 %v279
    %376 = vmatprep.subr.mxu0 0.0
    %377 = vmatpush1.msra.mxu0 %v280
    %378 = vmatprep.subr.mxu0 0.0
    %379 = vmatpush1.msra.mxu0 %v281
    %380 = vmatprep.subr.mxu0 0.0
    %381 = vmatpush1.msra.mxu0 %v282
    %382 = vmatprep.subr.mxu0 0.0
    %383 = vmatpush1.msra.mxu0 %v283
    %384 = vmatprep.subr.mxu0 0.0
    %385 = vmatpush1.msra.mxu0 %v284
    %386 = vmatprep.subr.mxu0 0.0
    %387 = vmatpush1.msra.mxu0 %v285
    %388 = vmatprep.subr.mxu0 0.0
    %389 = vmatpush1.msra.mxu0 %v286
    %390 = vmatprep.mubr.f32.mxu0 %v252
    %391 = vmatmul.mubr.f32.gmra.mrb[0].mxu0 %v251
    %v392 = vpop.f32.mrb[0].mxu0
    %v393 = vadd.f32 %v324, %v392
    %v394 = vpop.f32.mrb[0].mxu0
    %395 = vdwg.mxu0
    %396 = vmatprep.subr.mxu0 0.0
    %397 = vmatpush1.msra.mxu0 %v287
    %398 = vmatprep.subr.mxu0 0.0
    %399 = vmatpush1.msra.mxu0 %v288
    %400 = vmatprep.subr.mxu0 0.0
    %401 = vmatpush1.msra.mxu0 %v289
    %402 = vmatprep.subr.mxu0 0.0
    %403 = vmatpush1.msra.mxu0 %v290
    %404 = vmatprep.subr.mxu0 0.0
    %405 = vmatpush1.msra.mxu0 %v291
    %406 = vmatprep.subr.mxu0 0.0
    %407 = vmatpush1.msra.mxu0 %v292
    %408 = vmatprep.subr.mxu0 0.0
    %409 = vmatpush1.msra.mxu0 %v293
    %410 = vmatprep.subr.mxu0 0.0
    %411 = vmatpush1.msra.mxu0 %v294
    %412 = vmatprep.subr.mxu0 0.0
    %413 = vmatpush1.msra.mxu0 %v295
    %414 = vmatprep.subr.mxu0 0.0
    %415 = vmatpush1.msra.mxu0 %v296
    %416 = vmatprep.subr.mxu0 0.0
    %417 = vmatpush1.msra.mxu0 %v297
    %418 = vmatprep.subr.mxu0 0.0
    %419 = vmatpush1.msra.mxu0 %v298
    %420 = vmatprep.subr.mxu0 0.0
    %421 = vmatpush1.msra.mxu0 %v299
    %422 = vmatprep.subr.mxu0 0.0
    %423 = vmatpush1.msra.mxu0 %v300
    %424 = vmatprep.subr.mxu0 0.0
    %425 = vmatpush1.msra.mxu0 %v301
    %426 = vmatprep.subr.mxu0 0.0
    %427 = vmatpush1.msra.mxu0 %v302
    %428 = vmatprep.subr.mxu0 0.0
    %429 = vmatpush1.msra.mxu0 %v303
    %430 = vmatprep.subr.mxu0 0.0
    %431 = vmatpush1.msra.mxu0 %v304
    %432 = vmatprep.subr.mxu0 0.0
    %433 = vmatpush1.msra.mxu0 %v305
    %434 = vmatprep.subr.mxu0 0.0
    %435 = vmatpush1.msra.mxu0 %v306
    %436 = vmatprep.subr.mxu0 0.0
    %437 = vmatpush1.msra.mxu0 %v307
    %438 = vmatprep.subr.mxu0 0.0
    %439 = vmatpush1.msra.mxu0 %v308
    %440 = vmatprep.subr.mxu0 0.0
    %441 = vmatpush1.msra.mxu0 %v309
    %442 = vmatprep.subr.mxu0 0.0
    %443 = vmatpush1.msra.mxu0 %v310
    %444 = vmatprep.subr.mxu0 0.0
    %445 = vmatpush1.msra.mxu0 %v311
    %446 = vmatprep.subr.mxu0 0.0
    %447 = vmatpush1.msra.mxu0 %v312
    %448 = vmatprep.subr.mxu0 0.0
    %449 = vmatpush1.msra.mxu0 %v313
    %450 = vmatprep.subr.mxu0 0.0
    %451 = vmatpush1.msra.mxu0 %v314
    %452 = vmatprep.subr.mxu0 0.0
    %453 = vmatpush1.msra.mxu0 %v315
    %454 = vmatprep.subr.mxu0 0.0
    %455 = vmatpush1.msra.mxu0 %v316
    %456 = vmatprep.subr.mxu0 0.0
    %457 = vmatpush1.msra.mxu0 %v317
    %458 = vmatprep.subr.mxu0 0.0
    %459 = vmatpush1.msra.mxu0 %v318
    %460 = vmatprep.mubr.f32.mxu0 %v254
    %461 = vmatmul.mubr.f32.gmra.mrb[0].mxu0 %v253
    %v462 = vpop.f32.mrb[0].mxu0
    %v463 = vadd.f32 %v393, %v462
    %v464 = vpop.f32.mrb[0].mxu0
    %465 = vdwg.mxu0
    %v466 = vmax.f32 %v463, 0.0
    %v467 = vld [vmem:[#allocation6] sm:$0xff]
    %v468 = vld [vmem:[#allocation6 + $0x8] sm:$0xff]
    %v469 = vld [vmem:[#allocation6 + $0x10] sm:$0xff]
    %v470 = vld [vmem:[#allocation6 + $0x18] sm:$0xff]
    %v471 = vld [vmem:[#allocation6 + $0x20] sm:$0xff]
    %v472 = vld [vmem:[#allocation6 + $0x28] sm:$0xff]
    %v473 = vld [vmem:[#allocation6 + $0x30] sm:$0xff]
    %v474 = vld [vmem:[#allocation6 + $0x38] sm:$0xff]
    %v475 = vld [vmem:[#allocation6 + $0x40] sm:$0xff]
    %v476 = vld [vmem:[#allocation6 + $0x48] sm:$0xff]
    %v477 = vld [vmem:[#allocation6 + $0x50] sm:$0xff]
    %v478 = vld [vmem:[#allocation6 + $0x58] sm:$0xff]
    %v479 = vld [vmem:[#allocation6 + $0x60] sm:$0xff]
    %v480 = vld [vmem:[#allocation6 + $0x68] sm:$0xff]
    %v481 = vld [vmem:[#allocation6 + $0x70] sm:$0xff]
    %v482 = vld [vmem:[#allocation6 + $0x78] sm:$0xff]
    %v483 = vld [vmem:[%s6] sm:$0x1]
    %v485 = vlaneseq
    %v486 = vshrl.u32 %v485, 7
    %v487 = vsub.s32 0, %v486
    %v488 = vrot.slane %v483, %v487
    %490 = vmatprep.subr.mxu0 0.0
    %491 = vmatpush1.msra.mxu0 %v467
    %492 = vmatprep.subr.mxu0 0.0
    %493 = vmatpush1.msra.mxu0 %v468
    %494 = vmatprep.subr.mxu0 0.0
    %495 = vmatpush1.msra.mxu0 %v469
    %496 = vmatprep.subr.mxu0 0.0
    %497 = vmatpush1.msra.mxu0 %v470
    %498 = vmatprep.subr.mxu0 0.0
    %499 = vmatpush1.msra.mxu0 %v471
    %500 = vmatprep.subr.mxu0 0.0
    %501 = vmatpush1.msra.mxu0 %v472
    %502 = vmatprep.subr.mxu0 0.0
    %503 = vmatpush1.msra.mxu0 %v473
    %504 = vmatprep.subr.mxu0 0.0
    %505 = vmatpush1.msra.mxu0 %v474
    %506 = vmatprep.subr.mxu0 0.0
    %507 = vmatpush1.msra.mxu0 %v475
    %508 = vmatprep.subr.mxu0 0.0
    %509 = vmatpush1.msra.mxu0 %v476
    %510 = vmatprep.subr.mxu0 0.0
    %511 = vmatpush1.msra.mxu0 %v477
    %512 = vmatprep.subr.mxu0 0.0
    %513 = vmatpush1.msra.mxu0 %v478
    %514 = vmatprep.subr.mxu0 0.0
    %515 = vmatpush1.msra.mxu0 %v479
    %516 = vmatprep.subr.mxu0 0.0
    %517 = vmatpush1.msra.mxu0 %v480
    %518 = vmatprep.subr.mxu0 0.0
    %519 = vmatpush1.msra.mxu0 %v481
    %520 = vmatprep.subr.mxu0 0.0
    %521 = vmatpush1.msra.mxu0 %v482
    %522 = vmatprep.subr.mxu0 0.0
    %523 = vmatpush1.msra.mxu0 0.0
    %524 = vmatprep.subr.mxu0 0.0
    %525 = vmatpush1.msra.mxu0 0.0
    %526 = vmatprep.subr.mxu0 0.0
    %527 = vmatpush1.msra.mxu0 0.0
    %528 = vmatprep.subr.mxu0 0.0
    %529 = vmatpush1.msra.mxu0 0.0
    %530 = vmatprep.subr.mxu0 0.0
    %531 = vmatpush1.msra.mxu0 0.0
    %532 = vmatprep.subr.mxu0 0.0
    %533 = vmatpush1.msra.mxu0 0.0
    %534 = vmatprep.subr.mxu0 0.0
    %535 = vmatpush1.msra.mxu0 0.0
    %536 = vmatprep.subr.mxu0 0.0
    %537 = vmatpush1.msra.mxu0 0.0
    %538 = vmatprep.subr.mxu0 0.0
    %539 = vmatpush1.msra.mxu0 0.0
    %540 = vmatprep.subr.mxu0 0.0
    %541 = vmatpush1.msra.mxu0 0.0
    %542 = vmatprep.subr.mxu0 0.0
    %543 = vmatpush1.msra.mxu0 0.0
    %544 = vmatprep.subr.mxu0 0.0
    %545 = vmatpush1.msra.mxu0 0.0
    %546 = vmatprep.subr.mxu0 0.0
    %547 = vmatpush1.msra.mxu0 0.0
    %548 = vmatprep.subr.mxu0 0.0
    %549 = vmatpush1.msra.mxu0 0.0
    %550 = vmatprep.subr.mxu0 0.0
    %551 = vmatpush1.msra.mxu0 0.0
    %552 = vmatprep.subr.mxu0 0.0
    %553 = vmatpush1.msra.mxu0 0.0
    %554 = vmatprep.mubr.f32.mxu0 0.0
    %555 = vmatmul.mubr.f32.gmra.mrb[0].mxu0 %v466
    %v556 = vpop.f32.mrb[0].mxu0
    %v557 = vadd.f32 %v488, %v556
    %v558 = vpop.f32.mrb[0].mxu0
    %559 = vdwg.mxu0
    %vm560 = vcmask 15360
    %561 = vst.msk [vmem:[%s7] sm:$0xff] %vm560, %v557
    // Predicated region
    $region42: #{policy_network_forward.1} parent=1 // pred_check
      _
    $region43: #{policy_network_forward.1} parent=1 // pred_check_branch
      %563 = sbr.rel (0) target = $region45
    $region44: #{policy_network_forward.1} parent=1 // pred_region
      _
    $region45: #{policy_network_forward.1} parent=1 // pred_fallthru
      _
    // Predicated region
    $region46: #{policy_network_forward.1} parent=1 // pred_check
      _
    $region47: #{policy_network_forward.1} parent=1 // pred_check_branch
      %565 = sbr.rel (0) target = $region49
    $region48: #{policy_network_forward.1} parent=1 // pred_region
      _
    $region49: #{policy_network_forward.1} parent=1 // pred_fallthru
      _
    %566 = vsyncpa [#allocation3], 1
    %567 = vsyncpa [#allocation5], 1

</llo_original>
